<compile_context>
chip_gen: v5e
topology: v5e:2x2
jax: 0.10.0
libtpu: 0.0.40
codegen_flags: <defaults>
</compile_context>

<pallas_src>
import functools

import jax
import jax.numpy as jnp
from jax import lax
from jax.experimental import pallas as pl
from jax.experimental.pallas import tpu as pltpu

ALPHA = 1.0
GAMMA = 2.0  # kernel hardcodes the gamma == 2 case as an explicit square


def _round_up(x, m):
    return (x + m - 1) // m * m


def focal_loss_kernel(logits_ref, targets_ref, partial_ref, *, n_total, block_n):
    pid = pl.program_id(0)

    x = logits_ref[...]                                   # (bn, C) native dtype (f32/bf16)
    t = targets_ref[...]                                  # (bn, 1) int32

    # Row max and target-class select stay on the native tile (exact ops);
    # everything fed to exp/log is f32 for a numerically stable log-sum-exp.
    m = jnp.max(x, axis=-1, keepdims=True).astype(jnp.float32)            # (bn, 1)
    xs = x.astype(jnp.float32) - m                                        # (bn, C) f32
    lse = m + jnp.log(jnp.sum(jnp.exp(xs), axis=-1, keepdims=True))       # (bn, 1)

    # target-class logit via select-and-reduce (no materialized one-hot)
    cls_idx = lax.broadcasted_iota(jnp.int32, x.shape, 1)                 # (bn, C)
    x_t = jnp.sum(jnp.where(cls_idx == t, x, jnp.zeros_like(x)),
                  axis=-1, keepdims=True, dtype=jnp.float32)              # (bn, 1)

    # per-row cross entropy (reduction='none') and focal weighting
    ce = lse - x_t
    pt = jnp.exp(-ce)
    u = 1.0 - pt
    f_loss = ALPHA * (u * u) * ce                 # gamma == 2 -> square, not pow

    # mask padded tail rows so the partial last block does not pollute the mean
    row = pid * block_n + lax.broadcasted_iota(jnp.int32, (block_n, 1), 0)
    f_loss = jnp.where(row < n_total, f_loss, 0.0)

    # per-block partial sum, broadcast into one lane-dense (8,128) vreg block;
    # distinct output block per grid step -> safe under "parallel" (megacore).
    partial_ref[...] = jnp.full(partial_ref.shape, jnp.sum(f_loss), jnp.float32)


def focal_loss(logits, targets, *, max_block_n=None,
               target_tile_bytes=2 << 20, pipeline_budget_bytes=16 << 20):
    """logits: (N, C) float (f32 or bf16); targets: (N,) int class ids. -> scalar f32."""
    n, c = logits.shape
    itemsize = jnp.dtype(logits.dtype).itemsize
    mult = 16 if itemsize < 4 else 8              # bf16 packs 16 rows / sublane-pair
    targets2d = targets.astype(jnp.int32).reshape(n, 1)

    # Auto-size the batch tile:
    #  - logits tile in the ~1-4 MiB sweet spot for BlockSpec pipelining,
    #  - double-buffered (logits + lane-padded targets) under the pipeline budget
    #    (the (bn,1) int32 targets block pads lanes 1 -> 128 = 512 B/row/buffer),
    #  - never larger than N (rounded up to the sublane multiple).
    per_row_bytes = c * itemsize + 128 * 4
    bn = min(max(target_tile_bytes // (c * itemsize), 1),
             max(pipeline_budget_bytes // (2 * per_row_bytes), 1),
             _round_up(n, mult))
    if max_block_n is not None:
        bn = min(bn, max_block_n)
    bn = max(mult, (bn // mult) * mult)
    grid_n = pl.cdiv(n, bn)

    # Scoped-VMEM request sized from the actual tiles (+ headroom for the f32
    # elementwise intermediates of one block), not a blanket 48 MiB; stays well
    # inside v7x's 64 MiB physical VMEM and above v5e's 16 MiB scoped default.
    vmem_need = 2 * bn * per_row_bytes + 4 * bn * c * 4 + 2 * 8 * 128 * 4
    vmem_limit = int(min(56 << 20, max(vmem_need + (2 << 20), 16 << 20)))

    kernel = functools.partial(focal_loss_kernel, n_total=n, block_n=bn)

    partials = pl.pallas_call(
        kernel,
        out_shape=jax.ShapeDtypeStruct((grid_n, 8, 128), jnp.float32),
        grid=(grid_n,),
        in_specs=[
            pl.BlockSpec((bn, c), lambda i: (i, 0)),   # logits tile (double-buffered)
            pl.BlockSpec((bn, 1), lambda i: (i, 0)),   # targets tile
        ],
        out_specs=pl.BlockSpec((1, 8, 128), lambda i: (i, 0, 0)),
        compiler_params=pltpu.CompilerParams(
            dimension_semantics=("parallel",),         # no shared accumulator -> 2-TC safe
            vmem_limit_bytes=vmem_limit,
        ),
    )(logits, targets2d)

    # Final reduction of per-block partial sums in plain JAX (exact, and keeps
    # the grid axis parallel so v7x's two TensorCores both get work).
    return jnp.sum(partials[:, 0, 0]) / jnp.float32(n)


def focal_loss_ref(logits, targets):
    """Plain-JAX reference matching F.cross_entropy(reduction='none') + focal + mean."""
    logp = jax.nn.log_softmax(logits.astype(jnp.float32), axis=-1)
    ce = -jnp.take_along_axis(logp, targets[:, None].astype(jnp.int32), axis=-1)[:, 0]
    pt = jnp.exp(-ce)
    return jnp.mean(ALPHA * (1.0 - pt) ** GAMMA * ce)


if __name__ == "__main__":
    key = jax.random.PRNGKey(0)
    k1, k2, k3, k4 = jax.random.split(key, 4)

    # small demo: single block
    N, C = 8, 32
    logits = jax.random.normal(k1, (N, C), dtype=jnp.float32)
    targets = jax.random.randint(k2, (N,), 0, C, dtype=jnp.int32)
    loss = focal_loss(logits, targets)
    jax.block_until_ready(loss)
    ref = focal_loss_ref(logits, targets)
    assert jnp.allclose(loss, ref, atol=1e-5, rtol=1e-5), (loss, ref)

    # tiled path: multi-block "parallel" grid with a masked partial tail block
    N2, C2 = 50, 32
    logits2 = jax.random.normal(k3, (N2, C2), dtype=jnp.float32)
    targets2 = jax.random.randint(k4, (N2,), 0, C2, dtype=jnp.int32)
    loss2 = focal_loss(logits2, targets2, max_block_n=16)
    jax.block_until_ready(loss2)
    ref2 = focal_loss_ref(logits2, targets2)
    assert jnp.allclose(loss2, ref2, atol=1e-5, rtol=1e-5), (loss2, ref2)

    # bf16 logits path (halved HBM traffic; exp/log compute stays f32)
    logits2_bf16 = logits2.astype(jnp.bfloat16)
    loss3 = focal_loss(logits2_bf16, targets2, max_block_n=16)
    jax.block_until_ready(loss3)
    ref3 = focal_loss_ref(logits2_bf16, targets2)
    assert jnp.allclose(loss3, ref3, atol=1e-5, rtol=1e-5), (loss3, ref3)

    print("KERNEL_OK")
</pallas_src>

<mosaic_0001>
module attributes {stable_mosaic.version = 11 : i64} {
  func.func @focal_loss_kernel(%arg0: i32, %arg1: memref<8x32xf32, #tpu.memory_space<vmem>>, %arg2: memref<8x1xi32, #tpu.memory_space<vmem>>, %arg3: memref<1x8x128xf32, #tpu.memory_space<vmem>>) attributes {dimension_semantics = [#tpu.dimension_semantics<parallel>], iteration_bounds = array<i64: 1>, scalar_prefetch = 0 : i64, scratch_operands = 0 : i64, tpu.core_type = #tpu.core_type<tc>, window_params = [{transform_indices = @transform_0, window_bounds = array<i64: 8, 32>}, {transform_indices = @transform_1, window_bounds = array<i64: 8, 1>}, {transform_indices = @transform_2, window_bounds = array<i64: 1, 8, 128>}]} {
    %c0 = arith.constant 0 : index
    %c0_0 = arith.constant 0 : index
    %0 = vector.load %arg1[%c0, %c0_0] : memref<8x32xf32, #tpu.memory_space<vmem>>, vector<8x32xf32>
    %c0_1 = arith.constant 0 : index
    %c0_2 = arith.constant 0 : index
    %1 = vector.load %arg2[%c0_1, %c0_2] : memref<8x1xi32, #tpu.memory_space<vmem>>, vector<8x1xi32>
    %cst = arith.constant dense<0xFF800000> : vector<8xf32>
    %2 = vector.multi_reduction <maximumf>, %0, %cst [1] : vector<8x32xf32> to vector<8xf32>
    %3 = vector.shape_cast %2 : vector<8xf32> to vector<8x1xf32>
    %4 = vector.broadcast %3 : vector<8x1xf32> to vector<8x32xf32>
    %5 = arith.subf %0, %4 : vector<8x32xf32>
    %6 = math.exp %5 : vector<8x32xf32>
    %cst_3 = arith.constant dense<0.000000e+00> : vector<8xf32>
    %7 = vector.multi_reduction <add>, %6, %cst_3 [1] : vector<8x32xf32> to vector<8xf32>
    %8 = vector.shape_cast %7 : vector<8xf32> to vector<8x1xf32>
    %9 = math.log %8 : vector<8x1xf32>
    %10 = arith.addf %3, %9 : vector<8x1xf32>
    %11 = tpu.iota {dimensions = array<i32: 1>} : vector<8x32xi32>
    %12 = vector.broadcast %1 : vector<8x1xi32> to vector<8x32xi32>
    %13 = arith.cmpi eq, %11, %12 : vector<8x32xi32>
    %cst_4 = arith.constant 0.000000e+00 : f32
    %14 = vector.broadcast %cst_4 : f32 to vector<8x32xf32>
    %15 = arith.select %13, %0, %14 : vector<8x32xi1>, vector<8x32xf32>
    %cst_5 = arith.constant dense<0.000000e+00> : vector<8xf32>
    %16 = vector.multi_reduction <add>, %15, %cst_5 [1] : vector<8x32xf32> to vector<8xf32>
    %17 = vector.shape_cast %16 : vector<8xf32> to vector<8x1xf32>
    %18 = arith.subf %10, %17 : vector<8x1xf32>
    %cst_6 = arith.constant 0.000000e+00 : f32
    %19 = vector.broadcast %cst_6 : f32 to vector<8x1xf32>
    %20 = arith.subf %19, %18 : vector<8x1xf32>
    %21 = math.exp %20 : vector<8x1xf32>
    %cst_7 = arith.constant 1.000000e+00 : f32
    %22 = vector.broadcast %cst_7 : f32 to vector<8x1xf32>
    %23 = arith.subf %22, %21 : vector<8x1xf32>
    %24 = arith.mulf %23, %23 : vector<8x1xf32>
    %cst_8 = arith.constant 1.000000e+00 : f32
    %25 = vector.broadcast %cst_8 : f32 to vector<8x1xf32>
    %26 = arith.mulf %25, %24 : vector<8x1xf32>
    %27 = arith.mulf %26, %18 : vector<8x1xf32>
    %c8_i32 = arith.constant 8 : i32
    %28 = arith.muli %arg0, %c8_i32 : i32
    %29 = tpu.iota {dimensions = array<i32: 0>} : vector<8x1xi32>
    %30 = vector.broadcast %28 : i32 to vector<8x1xi32>
    %31 = arith.addi %30, %29 : vector<8x1xi32>
    %c8_i32_9 = arith.constant 8 : i32
    %32 = vector.broadcast %c8_i32_9 : i32 to vector<8x1xi32>
    %33 = arith.cmpi slt, %31, %32 : vector<8x1xi32>
    %cst_10 = arith.constant 0.000000e+00 : f32
    %34 = vector.broadcast %cst_10 : f32 to vector<8x1xf32>
    %35 = arith.select %33, %27, %34 : vector<8x1xi1>, vector<8x1xf32>
    %36 = vector.shape_cast %35 : vector<8x1xf32> to vector<1x8x1xf32>
    %cst_11 = arith.constant dense<0.000000e+00> : vector<1xf32>
    %37 = vector.multi_reduction <add>, %36, %cst_11 [1, 2] : vector<1x8x1xf32> to vector<1xf32>
    %38 = vector.shape_cast %37 : vector<1xf32> to vector<1x1x1xf32>
    %39 = vector.extract %38[0, 0, 0] : f32 from vector<1x1x1xf32>
    %40 = vector.broadcast %39 : f32 to vector<1x8x128xf32>
    %c0_12 = arith.constant 0 : index
    %c0_13 = arith.constant 0 : index
    %c0_14 = arith.constant 0 : index
    %41 = vector.load %arg3[%c0_12, %c0_13, %c0_14] : memref<1x8x128xf32, #tpu.memory_space<vmem>>, vector<1x8x128xf32>
    tpu.vector_store %arg3[%c0_12, %c0_13, %c0_14], %40 {strides = array<i32>} : memref<1x8x128xf32, #tpu.memory_space<vmem>>, vector<1x8x128xf32>,
    return
  }
  func.func @transform_0(%arg0: i32) -> (i32, i32) {
    %c0_i32 = arith.constant 0 : i32
    %c0_i32_0 = arith.constant 0 : i32
    return %arg0, %c0_i32 : i32, i32
  }
  func.func @transform_1(%arg0: i32) -> (i32, i32) {
    %c0_i32 = arith.constant 0 : i32
    %c0_i32_0 = arith.constant 0 : i32
    return %arg0, %c0_i32 : i32, i32
  }
  func.func @transform_2(%arg0: i32) -> (i32, i32, i32) {
    %c0_i32 = arith.constant 0 : i32
    %c0_i32_0 = arith.constant 0 : i32
    %c0_i32_1 = arith.constant 0 : i32
    return %arg0, %c0_i32, %c0_i32_0 : i32, i32, i32
  }
}

</mosaic_0001>

<llo_original>
// kernel: tpu_custom_call.1
$region0: #{tpu_custom_call.1}
  #allocation0 [shape = 'u32[]', space=smem, size = 0x4, offset = 0x4, fixed_abs, tag = 'smem constant byte address 0x4 - core index']
  #allocation1 [shape = 'u32[72,128]{1,0:T(1,128)}', space=vmem, size = 0x9000, scoped, tag = 'internal scratch']
  %s0 = inlined_call_operand.vmem [shape: f32[8,32], index: 0, kind: input, shape index: {}]
  %s1 = inlined_call_operand.vmem [shape: s32[8,1], index: 1, kind: input, shape index: {}]
  %s2 = inlined_call_operand.hbm [shape: f32[1,8,128], index: 2, kind: output, shape index: {}]
  %s3 = sld [smem:[#allocation0]]
  $region18: #{tpu_custom_call.1} parent=0
    _
  %s5 = ssub.s32 1, %s3
  %s6 = scalar_select 0, %s5, %s3
  $region1: #{tpu_custom_call.1} parent=0
    #allocation2 [shape = 'u8[4096]{0}', space=vmem, size = 0x1000, scoped, tag = 'output window, operand 0, single buffered']
    #allocation3 [shape = 's32[1]{0}', space=sflag, size = 0x4, scoped, tag = 'scoped memory for tpu_custom_call.1']
    %7 = vsyncpa [#allocation3], 0
    // Predicated region
    $region2: #{tpu_custom_call.1} parent=1 // pred_check
      _
    $region3: #{tpu_custom_call.1} parent=1 // pred_check_branch
      %9 = sbr.rel (0) target = $region5
    $region4: #{tpu_custom_call.1} parent=1 // pred_region
      _
    $region5: #{tpu_custom_call.1} parent=1 // pred_fallthru
      _
    // Predicated region
    $region6: #{tpu_custom_call.1} parent=1 // pred_check
      _
    $region7: #{tpu_custom_call.1} parent=1 // pred_check_branch
      %11 = sbr.rel (0) target = $region9
    $region8: #{tpu_custom_call.1} parent=1 // pred_region
      _
    $region9: #{tpu_custom_call.1} parent=1 // pred_fallthru
      _
    %v12 = vld [vmem:[%s0] sm:$0xff]
    %v13 = vld [vmem:[%s1] sm:$0xff]
    %vm14 = vcmask 261120
    %v15 = vsel %vm14, %v12, -inf
    %16 = vmax.xlane.f32.xlu0 %v15
    %v17 = vpop.xlane.xlu0 %16
    %v18 = vsub.f32 %v12, %v17
    %v19 = vmul.f32 %v18, 1.442695
    %v20 = vpow.pop %v19
    %v21 = vsel %vm14, %v20, 0.0
    %22 = vadd.xlane.f32.xlu0 %v21
    %v23 = vpop.xlane.xlu0 %22
    %v24 = vlog2.pop %v23
    %v25 = vmul.f32 %v24, 0.6931472
    %v26 = vadd.f32 %v17, %v25
    %v27 = vlaneseq
    %v28 = vand.u32 %v27, 127
    %29 = vset.pattern.permute.xlu0 0
    %30 = vperm.xlu0 %29, %v13
    %v31 = vpop.permute.xlu0 %30
    %vm32 = vcmp.eq.s32.totalorder %v28, %v31
    %v33 = vsel %vm32, %v12, 0.0
    %v34 = vsel %vm14, %v33, 0.0
    %35 = vadd.xlane.f32.xlu0 %v34
    %v36 = vpop.xlane.xlu0 %35
    %v37 = vsub.f32 %v26, %v36
    %v38 = vsub.f32 0.0, %v37
    %v39 = vmul.f32 %v38, 1.442695
    %v40 = vpow.pop %v39
    %v41 = vsub.f32 1.0, %v40
    %v42 = vmul.f32 %v41, %v41
    %v43 = vmul.f32 %v42, %v37
    %s44 = smul.u32 0, 8
    %v45 = vlaneseq
    %v46 = vshrl.u32 %v45, 7
    %v47 = vstv %s44
    %v48 = vadd.s32 %v47, %v46
    %vm49 = vcmp.lt.s32.totalorder %v48, 8
    %v50 = vsel %vm49, %v43, 0.0
    %vm51 = vcmask 7168
    %v52 = vsel %vm51, %v50, 0.0
    %53 = vadd.xlane.f32.xlu0 %v52
    %v54 = vpop.xlane.xlu0 %53
    %v55 = vrot.slane %v54, 4
    %v56 = vadd.f32 %v54, %v55
    %v57 = vrot.slane %v56, 2
    %v58 = vadd.f32 %v56, %v57
    %v59 = vrot.slane %v58, 1
    %v60 = vadd.f32 %v58, %v59
    %s61 = vtos %v60
    %v62 = vstv %s61
    %63 = vst [vmem:[#allocation2] sm:$0xff] %v62
    // Predicated region
    $region10: #{tpu_custom_call.1} parent=1 // pred_check
      _
    $region11: #{tpu_custom_call.1} parent=1 // pred_check_branch
      %65 = sbr.rel (0) target = $region13
    $region12: #{tpu_custom_call.1} parent=1 // pred_region
      %67 = vsyncadd [#allocation3], 0
      %s69 = sshll.u32 [#allocation2], 4
      %s70 = int_to_ptr.vmem [resolvable:$true] %s69
      %s71 = sshll.u32 %s2, 4
      %s72 = int_to_ptr.hbm [resolvable:$true] %s71
      %74 = dma.vmem_to_hbm [thread:$0]  %s70, 128, %s72, [#allocation3]
    $region13: #{tpu_custom_call.1} parent=1 // pred_fallthru
      _
    // Predicated region
    $region14: #{tpu_custom_call.1} parent=1 // pred_check
      _
    $region15: #{tpu_custom_call.1} parent=1 // pred_check_branch
      %76 = sbr.rel (0) target = $region17
    $region16: #{tpu_custom_call.1} parent=1 // pred_region
      %78 = dma.done [#allocation3], 128
    $region17: #{tpu_custom_call.1} parent=1 // pred_fallthru
      _
    %79 = vsyncpa [#allocation3], 1

</llo_original>
